<compile_context>
chip_gen: v7x
topology: tpu7x:2x2x1
jax: 0.10.0
libtpu: 0.0.40
codegen_flags: <defaults>
</compile_context>

<pallas_src>
import jax
import jax.numpy as jnp
from jax.experimental import pallas as pl
from jax.experimental.pallas import tpu as pltpu


# ---------------------------- Pallas kernels ----------------------------

def _stem_norm_pool_kernel(p_ref, w_ref, b_ref, o_ref):
    # p_ref: (Nb, S, K)  bf16 im2col patches of Nb frames
    # w_ref: (K, C)      bf16 conv weight (resident across the grid)
    # b_ref: (1, C)      f32  conv bias   (resident across the grid)
    # o_ref: (1, Nb, C)  f32  pooled frame features
    nb, s, k = p_ref.shape
    c = w_ref.shape[1]

    # Conv stem on the MXU: M = Nb*S rows in one matmul (leading-dim collapse,
    # layout preserving), f32 accumulation, fused ReLU.
    p2 = p_ref[...].reshape(nb * s, k)
    acc = jnp.dot(p2, w_ref[...], preferred_element_type=jnp.float32)   # (Nb*S, C)
    f = jnp.maximum(acc + b_ref[...], 0.0)
    f3 = f.reshape(nb, s, c)                                            # (Nb, S, C)

    # InstanceNorm2d(256) stats over spatial S (eps=1e-5, no affine),
    # one-pass E[x^2] - mu^2 in f32 clamped at 0.
    mu = jnp.mean(f3, axis=1)                                           # (Nb, C)
    ex2 = jnp.mean(f3 * f3, axis=1)                                     # (Nb, C)
    var = jnp.maximum(ex2 - mu * mu, 0.0)
    inv = jax.lax.rsqrt(var + 1e-5)
    mx = jnp.max(f3, axis=1)                                            # (Nb, C)

    # 0.6 * avg_pool(xn) + 0.4 * max_pool(xn); the avg term is exactly zero
    # (mean of the normalized slab over the same axis), so only the max term
    # is computed.  The (S, C) normalized tensor is never materialized.
    o_ref[0] = 0.4 * (mx - mu) * inv


def _custom_mlp_kernel(x_ref, w1_ref, b1_ref, g_ref, be_ref, w2_ref, b2_ref, o_ref):
    # Linear(F,64) -> LayerNorm(64) -> ReLU -> Linear(64,32) -> Sigmoid
    h = jnp.dot(x_ref[...], w1_ref[...], preferred_element_type=jnp.float32) + b1_ref[...]
    mu = jnp.mean(h, axis=-1, keepdims=True)
    var = jnp.mean((h - mu) ** 2, axis=-1, keepdims=True)
    hn = (h - mu) * jax.lax.rsqrt(var + 1e-5) * g_ref[...] + be_ref[...]
    r = jnp.maximum(hn, 0.0)
    o = jnp.dot(r, w2_ref[...], preferred_element_type=jnp.float32) + b2_ref[...]
    o_ref[...] = 1.0 / (1.0 + jnp.exp(-o))


# ---------------------------- wrappers ----------------------------

def _choose_frames_per_step(n_frames, s, k, c,
                            vmem_budget_bytes=12 << 20, target_rows=1024):
    """Pick Nb (frames per grid step): divisor of N, VMEM-budgeted, keeps the
    matmul M = Nb*S around target_rows, and keeps >= 2 grid steps so v7x
    megacore has independent steps to shard."""
    per_frame = (s * k * 2) * 2 + (s * c * 4) * 2 + c * 4 * 2   # dbl-buf in + f32 slab
    cap = max(1, min(n_frames,
                     vmem_budget_bytes // per_frame,
                     max(1, target_rows // max(1, s))))
    if n_frames >= 2:
        cap = min(cap, max(1, n_frames // 2))
    nb = 1
    for d in range(1, cap + 1):
        if n_frames % d == 0:
            nb = d
    return nb


def frame_stem_norm_pool(patches, w, b, nb):
    """patches: (N, S, K) bf16; w: (K, C) bf16; b: (1, C) f32 -> (N, C) f32."""
    n, s, k = patches.shape
    c = w.shape[1]
    g = n // nb
    cost = pl.CostEstimate(
        flops=2 * n * s * k * c,
        transcendentals=0,
        bytes_accessed=(patches.size * patches.dtype.itemsize
                        + w.size * w.dtype.itemsize
                        + b.size * 4 + n * c * 4),
    )
    out = pl.pallas_call(
        _stem_norm_pool_kernel,
        grid=(g,),
        in_specs=[
            pl.BlockSpec((nb, s, k), lambda i: (i, 0, 0)),   # Nb-frame patch slab
            pl.BlockSpec((k, c), lambda i: (0, 0)),          # weight stays resident
            pl.BlockSpec((1, c), lambda i: (0, 0)),          # bias stays resident
        ],
        out_specs=pl.BlockSpec((1, nb, c), lambda i: (i, 0, 0)),
        out_shape=jax.ShapeDtypeStruct((g, nb, c), jnp.float32),
        compiler_params=pltpu.CompilerParams(
            dimension_semantics=("parallel",),
            vmem_limit_bytes=48 * 1024 * 1024,
            # Let XLA fuse the bf16-cast / im2col transpose into the input read.
            allow_input_fusion=[True, False, False],
        ),
        cost_estimate=cost,
    )(patches, w, b)
    return out.reshape(n, c)


def custom_mlp(x, w1, b1, gamma, beta, w2, b2):
    bp, f = x.shape
    h1 = w1.shape[1]
    h2 = w2.shape[1]
    return pl.pallas_call(
        _custom_mlp_kernel,
        grid=(1,),
        in_specs=[pl.BlockSpec((bp, f), lambda i: (0, 0)),
                  pl.BlockSpec((f, h1), lambda i: (0, 0)),
                  pl.BlockSpec((1, h1), lambda i: (0, 0)),
                  pl.BlockSpec((1, h1), lambda i: (0, 0)),
                  pl.BlockSpec((1, h1), lambda i: (0, 0)),
                  pl.BlockSpec((h1, h2), lambda i: (0, 0)),
                  pl.BlockSpec((1, h2), lambda i: (0, 0))],
        out_specs=pl.BlockSpec((bp, h2), lambda i: (0, 0)),
        out_shape=jax.ShapeDtypeStruct((bp, h2), jnp.float32),
    )(x, w1, b1, gamma, beta, w2, b2)


class FeatureExtractorPallas:
    """Pallas port of FeatureExtractor (synthetic deterministic trunk weights)."""

    C_OUT = 256   # channel count expected by InstanceNorm2d(256)
    PATCH = 8     # patchify stride of the CNN stand-in
    N_FRAMES = 4

    def __init__(self, custom_feature_size: int, c_in: int = 3, key=jax.random.PRNGKey(42)):
        k = jax.random.split(key, 6)
        self.kdim = c_in * self.PATCH * self.PATCH   # no 128-pad: full-dim block is legal

        # CNN stand-in (patchify conv) parameters — bf16 weight for the MXU.
        w = jax.random.normal(k[0], (self.kdim, self.C_OUT), jnp.float32) * 0.05
        self.w_conv = w.astype(jnp.bfloat16)
        self.b_conv = jax.random.normal(k[1], (1, self.C_OUT), jnp.float32) * 0.05

        # custom_feature_processor parameters (f32 — tiny, norm precision matters)
        self.w1 = jax.random.normal(k[2], (custom_feature_size, 64), jnp.float32) * 0.1
        self.b1 = jax.random.normal(k[3], (1, 64), jnp.float32) * 0.1
        self.gamma = jnp.ones((1, 64), jnp.float32)   # LayerNorm weight
        self.beta = jnp.zeros((1, 64), jnp.float32)   # LayerNorm bias
        self.w2 = jax.random.normal(k[4], (64, 32), jnp.float32) * 0.1
        self.b2 = jax.random.normal(k[5], (1, 32), jnp.float32) * 0.1

    def __call__(self, frames, custom_features):
        # frames: (B, 4, C_in, H, W); custom_features: (B, F)
        B, NF, Cin, H, W = frames.shape
        assert NF == self.N_FRAMES
        P = self.PATCH
        assert H % P == 0 and W % P == 0, "H and W must be multiples of PATCH"
        N = B * NF
        Hp, Wp = H // P, W // P
        S = Hp * Wp

        # --- glue: bf16 im2col for the shared CNN over all 4 frames at once.
        # allow_input_fusion on the pallas call lets XLA fold this producer
        # into the kernel's input DMA instead of materializing a copy in HBM.
        x = frames.astype(jnp.bfloat16).reshape(N, Cin, Hp, P, Wp, P)
        x = x.transpose(0, 2, 4, 1, 3, 5).reshape(N, S, self.kdim)

        # --- Pallas (fused): patchify conv + ReLU + InstanceNorm + pooling ---
        nb = _choose_frames_per_step(N, S, self.kdim, self.C_OUT)
        pooled = frame_stem_norm_pool(x, self.w_conv, self.b_conv, nb)     # (N, 256)
        frame_features = pooled.reshape(B, NF, self.C_OUT)                 # (B, 4, 256)

        # --- Pallas: custom feature MLP (rows padded to a multiple of 8) ---
        Bp = ((B + 7) // 8) * 8
        xf = custom_features.astype(jnp.float32)
        if Bp != B:
            xf = jnp.pad(xf, ((0, Bp - B), (0, 0)))
        processed_custom = custom_mlp(xf, self.w1, self.b1, self.gamma,
                                      self.beta, self.w2, self.b2)[:B]     # (B, 32)
        return frame_features, processed_custom


if __name__ == "__main__":
    key = jax.random.PRNGKey(0)
    k_frames, k_feat = jax.random.split(key)

    B, CUSTOM_F = 2, 16
    frames = jax.random.normal(k_frames, (B, 4, 3, 32, 32), jnp.float32)
    custom_features = jax.random.normal(k_feat, (B, CUSTOM_F), jnp.float32)

    model = FeatureExtractorPallas(custom_feature_size=CUSTOM_F)
    frame_features, processed_custom = model(frames, custom_features)
    frame_features = jax.block_until_ready(frame_features)
    processed_custom = jax.block_until_ready(processed_custom)

    assert frame_features.shape == (B, 4, 256), frame_features.shape
    assert processed_custom.shape == (B, 32), processed_custom.shape
    assert bool(jnp.all(jnp.isfinite(frame_features)))
    assert bool(jnp.all(jnp.isfinite(processed_custom)))
    assert bool(jnp.all((processed_custom >= 0.0) & (processed_custom <= 1.0)))

    print("KERNEL_OK")
</pallas_src>

<mosaic_0001>
module attributes {stable_mosaic.version = 11 : i64} {
  func.func @_stem_norm_pool_kernel(%arg0: i32, %arg1: memref<4x16x192xbf16, #tpu.memory_space<vmem>>, %arg2: memref<192x256xbf16, #tpu.memory_space<vmem>>, %arg3: memref<1x256xf32, #tpu.memory_space<vmem>>, %arg4: memref<1x4x256xf32, #tpu.memory_space<vmem>>) attributes {dimension_semantics = [#tpu.dimension_semantics<parallel>], iteration_bounds = array<i64: 2>, scalar_prefetch = 0 : i64, scratch_operands = 0 : i64, tpu.core_type = #tpu.core_type<tc>, window_params = [{transform_indices = @transform_0, window_bounds = array<i64: 4, 16, 192>}, {pipeline_mode = #tpu.pipeline_mode<synchronous>, transform_indices = @transform_1, window_bounds = array<i64: 192, 256>}, {pipeline_mode = #tpu.pipeline_mode<synchronous>, transform_indices = @transform_2, window_bounds = array<i64: 1, 256>}, {transform_indices = @transform_3, window_bounds = array<i64: 1, 4, 256>}]} {
    %c0 = arith.constant 0 : index
    %c0_0 = arith.constant 0 : index
    %c0_1 = arith.constant 0 : index
    %0 = vector.load %arg1[%c0, %c0_0, %c0_1] : memref<4x16x192xbf16, #tpu.memory_space<vmem>>, vector<4x16x192xbf16>
    %1 = vector.shape_cast %0 : vector<4x16x192xbf16> to vector<64x192xbf16>
    %c0_2 = arith.constant 0 : index
    %c0_3 = arith.constant 0 : index
    %2 = vector.load %arg2[%c0_2, %c0_3] : memref<192x256xbf16, #tpu.memory_space<vmem>>, vector<192x256xbf16>
    %cst = arith.constant dense<0.000000e+00> : vector<64x256xf32>
    %3 = tpu.matmul %1, %2, %cst {dimension_numbers = #tpu.dot_dimension_numbers<[1], [0], [0], [1], [0, 0, 1, 1], [], []>} : vector<64x192xbf16>, vector<192x256xbf16>, vector<64x256xf32> -> vector<64x256xf32>
    %c0_4 = arith.constant 0 : index
    %c0_5 = arith.constant 0 : index
    %4 = vector.load %arg3[%c0_4, %c0_5] : memref<1x256xf32, #tpu.memory_space<vmem>>, vector<1x256xf32>
    %5 = vector.broadcast %4 : vector<1x256xf32> to vector<64x256xf32>
    %6 = arith.addf %3, %5 : vector<64x256xf32>
    %cst_6 = arith.constant 0.000000e+00 : f32
    %7 = vector.broadcast %cst_6 : f32 to vector<64x256xf32>
    %8 = arith.maximumf %6, %7 : vector<64x256xf32>
    %9 = vector.shape_cast %8 : vector<64x256xf32> to vector<4x16x256xf32>
    %cst_7 = arith.constant dense<0.000000e+00> : vector<4x256xf32>
    %10 = vector.multi_reduction <add>, %9, %cst_7 [1] : vector<4x16x256xf32> to vector<4x256xf32>
    %cst_8 = arith.constant 1.600000e+01 : f32
    %11 = vector.broadcast %cst_8 : f32 to vector<4x256xf32>
    %12 = arith.divf %10, %11 : vector<4x256xf32>
    %13 = arith.mulf %9, %9 : vector<4x16x256xf32>
    %cst_9 = arith.constant dense<0.000000e+00> : vector<4x256xf32>
    %14 = vector.multi_reduction <add>, %13, %cst_9 [1] : vector<4x16x256xf32> to vector<4x256xf32>
    %cst_10 = arith.constant 1.600000e+01 : f32
    %15 = vector.broadcast %cst_10 : f32 to vector<4x256xf32>
    %16 = arith.divf %14, %15 : vector<4x256xf32>
    %17 = arith.mulf %12, %12 : vector<4x256xf32>
    %18 = arith.subf %16, %17 : vector<4x256xf32>
    %cst_11 = arith.constant 0.000000e+00 : f32
    %19 = vector.broadcast %cst_11 : f32 to vector<4x256xf32>
    %20 = arith.maximumf %18, %19 : vector<4x256xf32>
    %cst_12 = arith.constant 9.99999974E-6 : f32
    %21 = vector.broadcast %cst_12 : f32 to vector<4x256xf32>
    %22 = arith.addf %20, %21 : vector<4x256xf32>
    %23 = math.rsqrt %22 : vector<4x256xf32>
    %cst_13 = arith.constant dense<0xFF800000> : vector<4x256xf32>
    %24 = vector.multi_reduction <maximumf>, %9, %cst_13 [1] : vector<4x16x256xf32> to vector<4x256xf32>
    %25 = arith.subf %24, %12 : vector<4x256xf32>
    %cst_14 = arith.constant 4.000000e-01 : f32
    %26 = vector.broadcast %cst_14 : f32 to vector<4x256xf32>
    %27 = arith.mulf %26, %25 : vector<4x256xf32>
    %28 = arith.mulf %27, %23 : vector<4x256xf32>
    %c0_15 = arith.constant 0 : index
    %c0_16 = arith.constant 0 : index
    %c0_17 = arith.constant 0 : index
    %29 = vector.load %arg4[%c0_15, %c0_16, %c0_17] : memref<1x4x256xf32, #tpu.memory_space<vmem>>, vector<1x4x256xf32>
    %30 = vector.shape_cast %29 : vector<1x4x256xf32> to vector<4x256xf32>
    %31 = vector.shape_cast %28 : vector<4x256xf32> to vector<1x4x256xf32>
    tpu.vector_store %arg4[%c0_15, %c0_16, %c0_17], %31 {strides = array<i32>} : memref<1x4x256xf32, #tpu.memory_space<vmem>>, vector<1x4x256xf32>,
    return
  }
  func.func @transform_0(%arg0: i32) -> (i32, i32, i32) {
    %c0_i32 = arith.constant 0 : i32
    %c0_i32_0 = arith.constant 0 : i32
    %c0_i32_1 = arith.constant 0 : i32
    return %arg0, %c0_i32, %c0_i32_0 : i32, i32, i32
  }
  func.func @transform_1(%arg0: i32) -> (i32, i32) {
    %c0_i32 = arith.constant 0 : i32
    %c0_i32_0 = arith.constant 0 : i32
    %c0_i32_1 = arith.constant 0 : i32
    return %c0_i32, %c0_i32_0 : i32, i32
  }
  func.func @transform_2(%arg0: i32) -> (i32, i32) {
    %c0_i32 = arith.constant 0 : i32
    %c0_i32_0 = arith.constant 0 : i32
    %c0_i32_1 = arith.constant 0 : i32
    return %c0_i32, %c0_i32_0 : i32, i32
  }
  func.func @transform_3(%arg0: i32) -> (i32, i32, i32) {
    %c0_i32 = arith.constant 0 : i32
    %c0_i32_0 = arith.constant 0 : i32
    %c0_i32_1 = arith.constant 0 : i32
    return %arg0, %c0_i32, %c0_i32_0 : i32, i32, i32
  }
}

</mosaic_0001>

<llo_original>
// kernel: tpu_custom_call.1
$region0: #{tpu_custom_call.1}
  #allocation0 [shape = 'u32[]', space=smem, size = 0x4, offset = 0x4, fixed_abs, tag = 'smem constant byte address 0x4 - core index']
  #allocation1 [shape = 'u32[144,128]{1,0:T(1,128)}', space=vmem, size = 0x12000, scoped, tag = 'internal scratch']
  %s0 = inlined_call_operand.hbm [shape: bf16[8,16,192], index: 0, kind: input, shape index: {}]
  %s1 = inlined_call_operand.hbm [shape: bf16[192,256], index: 1, kind: input, shape index: {}]
  %s2 = inlined_call_operand.vmem [shape: f32[1,256], index: 2, kind: input, shape index: {}]
  %s3 = inlined_call_operand.hbm [shape: f32[2,4,256], index: 3, kind: output, shape index: {}]
  %s4 = sld [smem:[#allocation0]]
  $region53: #{tpu_custom_call.1} parent=0
    _
  %s6 = ssub.s32 1, %s4
  %s7 = scalar_select 0, %s6, %s4
  $region1: #{tpu_custom_call.1} parent=0
    #allocation2 [shape = 'u8[65536]{0}', space=vmem, size = 0x10000, scoped, tag = 'input window, operand 0']
    #allocation3 [shape = 's32[2]{0}', space=sflag, size = 0x8, scoped, tag = 'scoped memory for tpu_custom_call.1']
    #allocation4 [shape = 's32[2]{0}', space=sflag, size = 0x8, scoped, tag = 'scoped memory for tpu_custom_call.1']
    #allocation5 [shape = 'u8[98304]{0}', space=vmem, size = 0x18000, scoped, tag = 'input window, operand 1, single buffered']
    #allocation6 [shape = 's32[1]{0}', space=sflag, size = 0x4, scoped, tag = 'scoped memory for tpu_custom_call.1']
    #allocation7 [shape = 'u8[8192]{0}', space=vmem, size = 0x2000, scoped, tag = 'output window, operand 0']
    %8 = vsyncpa [#allocation3], 0
    %s9 = scalar_lea.sflag [#allocation3], 1
    %10 = vsyncpa %s9, 0
    %11 = vsyncpa [#allocation6], 0
    %12 = vsyncpa [#allocation4], 0
    %s13 = scalar_lea.sflag [#allocation4], 1
    %14 = vsyncpa %s13, 0
    loop: start=0, step=1, limit=4
    $region2: #{tpu_custom_call.1} parent=1 // loop_pre_header
      _
    $region3: #{tpu_custom_call.1} parent=1 // loop_header
      %s16 = sphi 0, %s20
      %p17 = scmp.ge.s32.totalorder %s16, 4
      %s26 = sphi 0, %s28
      %s29 = sphi 0, %s26
      %s30 = sphi 0, %s29
      %s46 = sphi 0, %s30
      %s50 = sphi 0, %s50
      %s52 = sphi 0, %s50
      %s53 = sphi 0, %s52
      %s67 = sphi 0, %s53
      %s71 = sphi 0, %s71
      %s73 = sphi 0, %s71
      %s74 = sphi 0, %s73
      %s88 = sphi 0, %s74
      %s94 = sphi 0, %s96
      %s97 = sphi 0, %s94
      %s98 = sphi 0, %s97
      %s114 = sphi 0, %s98
    $region4: #{tpu_custom_call.1} parent=1 // loop_header_branch
      %19 = sbr.rel (%p17) target = $region8
    $region5: #{tpu_custom_call.1} parent=1 // loop_body
      %s21 = ssub.s32 %s16, 1
      %s22 = ssub.s32 %s16, 2
      %s23 = sadd.s32 %s16, 1
      %s24 = ssub.s32 %s16, %s23
      %p25 = scmp.eq.s32.totalorder %s24, 0
      %s27 = sadd.s32 %s26, 1
      %s28 = scalar_select %p25, %s26, %s27
      %p31 = pneg %p25
      %p32 = scmp.eq.s32.totalorder %s16, 1
      %p33 = por %p31, %p32
      %p34 = scmp.ne.s32.totalorder %s26, %s29
      %p35 = scmp.eq.s32.totalorder %s16, 0
      %p36 = por %p34, %p35
      %p37 = scmp.ne.s32.totalorder %s26, %s29
      %p38 = scmp.eq.s32.totalorder %s21, 1
      %p39 = por %p37, %p38
      %p40 = scmp.ne.s32.totalorder %s29, %s30
      %p41 = scmp.eq.s32.totalorder %s21, 0
      %p42 = por %p40, %p41
      %p43 = scmp.ne.s32.totalorder %s29, %s30
      %p44 = scmp.eq.s32.totalorder %s22, 1
      %p45 = por %p43, %p44
      %p47 = scmp.ne.s32.totalorder %s30, %s46
      %p48 = scmp.eq.s32.totalorder %s22, 0
      %p49 = por %p47, %p48
      %s51 = sadd.s32 %s50, 1
      %p54 = scmp.eq.s32.totalorder %s16, 1
      %p55 = scmp.ne.s32.totalorder %s50, %s52
      %p56 = scmp.eq.s32.totalorder %s16, 0
      %p57 = por %p55, %p56
      %p58 = scmp.ne.s32.totalorder %s50, %s52
      %p59 = scmp.eq.s32.totalorder %s21, 1
      %p60 = por %p58, %p59
      %p61 = scmp.ne.s32.totalorder %s52, %s53
      %p62 = scmp.eq.s32.totalorder %s21, 0
      %p63 = por %p61, %p62
      %p64 = scmp.ne.s32.totalorder %s52, %s53
      %p65 = scmp.eq.s32.totalorder %s22, 1
      %p66 = por %p64, %p65
      %p68 = scmp.ne.s32.totalorder %s53, %s67
      %p69 = scmp.eq.s32.totalorder %s22, 0
      %p70 = por %p68, %p69
      %s72 = sadd.s32 %s71, 1
      %p75 = scmp.eq.s32.totalorder %s16, 1
      %p76 = scmp.ne.s32.totalorder %s71, %s73
      %p77 = scmp.eq.s32.totalorder %s16, 0
      %p78 = por %p76, %p77
      %p79 = scmp.ne.s32.totalorder %s71, %s73
      %p80 = scmp.eq.s32.totalorder %s21, 1
      %p81 = por %p79, %p80
      %p82 = scmp.ne.s32.totalorder %s73, %s74
      %p83 = scmp.eq.s32.totalorder %s21, 0
      %p84 = por %p82, %p83
      %p85 = scmp.ne.s32.totalorder %s73, %s74
      %p86 = scmp.eq.s32.totalorder %s22, 1
      %p87 = por %p85, %p86
      %p89 = scmp.ne.s32.totalorder %s74, %s88
      %p90 = scmp.eq.s32.totalorder %s22, 0
      %p91 = por %p89, %p90
      %s92 = ssub.s32 %s16, %s23
      %p93 = scmp.eq.s32.totalorder %s92, 0
      %s95 = sadd.s32 %s94, 1
      %s96 = scalar_select %p93, %s94, %s95
      %p99 = pneg %p93
      %p100 = scmp.eq.s32.totalorder %s16, 1
      %p101 = por %p99, %p100
      %p102 = scmp.ne.s32.totalorder %s94, %s97
      %p103 = scmp.eq.s32.totalorder %s16, 0
      %p104 = por %p102, %p103
      %p105 = scmp.ne.s32.totalorder %s94, %s97
      %p106 = scmp.eq.s32.totalorder %s21, 1
      %p107 = por %p105, %p106
      %p108 = scmp.ne.s32.totalorder %s97, %s98
      %p109 = scmp.eq.s32.totalorder %s21, 0
      %p110 = por %p108, %p109
      %p111 = scmp.ne.s32.totalorder %s97, %s98
      %p112 = scmp.eq.s32.totalorder %s22, 1
      %p113 = por %p111, %p112
      %p115 = scmp.ne.s32.totalorder %s98, %s114
      %p116 = scmp.eq.s32.totalorder %s22, 0
      %p117 = por %p115, %p116
      %p118 = scmp.le.s32.totalorder 1, %s16
      %p119 = scmp.lt.s32.totalorder %s16, 3
      %p120 = pnand %p118, %p119
      %p121 = pneg %p120
      // Predicated region
      $region9: #{tpu_custom_call.1} parent=5 // pred_check
        _
      $region10: #{tpu_custom_call.1} parent=5 // pred_check_branch
        %123 = sbr.rel (%p120) target = $region12
      $region11: #{tpu_custom_call.1} parent=5 // pred_region
        %s124 = ssub.s32 %s16, 1
        // Predicated region
        $region13: #{tpu_custom_call.1} parent=11 // pred_check
          %p125 = pneg %p63
        $region14: #{tpu_custom_call.1} parent=11 // pred_check_branch
          %127 = sbr.rel (%p125) target = $region16
        $region15: #{tpu_custom_call.1} parent=11 // pred_region
          %s129 = ssub.s32 3072, 3072
          %130 = vsyncadd [#allocation6], %s129
          %s131 = sshll.u32 [#allocation5], 4
          %s132 = int_to_ptr.vmem [resolvable:$true] %s131
          %137 = dma.hbm_to_vmem [thread:$0]  %s1, 3072, %s132, [#allocation6], 128, 128, 8
        $region16: #{tpu_custom_call.1} parent=11 // pred_fallthru
          _
        // Predicated region
        $region17: #{tpu_custom_call.1} parent=11 // pred_check
          %p138 = pneg %p84
        $region18: #{tpu_custom_call.1} parent=11 // pred_check_branch
          %140 = sbr.rel (%p138) target = $region20
        $region19: #{tpu_custom_call.1} parent=11 // pred_region
          _
        $region20: #{tpu_custom_call.1} parent=11 // pred_fallthru
          _
      $region12: #{tpu_custom_call.1} parent=5 // pred_fallthru
        _
      %p141 = scmp.lt.s32.totalorder %s16, 2
      // Predicated region
      $region21: #{tpu_custom_call.1} parent=5 // pred_check
        %p142 = pneg %p141
      $region22: #{tpu_custom_call.1} parent=5 // pred_check_branch
        %144 = sbr.rel (%p142) target = $region24
      $region23: #{tpu_custom_call.1} parent=5 // pred_region
        // Predicated region
        $region25: #{tpu_custom_call.1} parent=23 // pred_check
          %p145 = pneg %p36
        $region26: #{tpu_custom_call.1} parent=23 // pred_check_branch
          %147 = sbr.rel (%p145) target = $region28
        $region27: #{tpu_custom_call.1} parent=23 // pred_region
          %s148 = sand.u32 %s26, 1
          %s149 = scalar_lea.sflag [#allocation3], %s148
          %s150 = sand.u32 %s26, 1
          %s151 = smul.addr %s150, 64
          %s152 = scalar_lea.vmem [#allocation2], %s151
          %s153 = smul.u32 4, %s16
          %s155 = ssub.s32 1024, 1024
          %156 = vsyncadd %s149, %s155
          %s157 = smul.addr %s153, 4
          %s158 = smul.addr %s157, 64
          %s159 = scalar_lea.hbm %s0, %s158
          %s160 = sshll.u32 %s152, 4
          %s161 = int_to_ptr.vmem [resolvable:$true] %s160
          %166 = dma.hbm_to_vmem [thread:$0]  %s159, 1024, %s161, %s149, 128, 128, 8
        $region28: #{tpu_custom_call.1} parent=23 // pred_fallthru
          _
      $region24: #{tpu_custom_call.1} parent=5 // pred_fallthru
        _
      %p167 = scmp.le.s32.totalorder 1, %s16
      %p168 = scmp.lt.s32.totalorder %s16, 3
      %p169 = pnand %p167, %p168
      %p170 = pneg %p169
      // Predicated region
      $region29: #{tpu_custom_call.1} parent=5 // pred_check
        _
      $region30: #{tpu_custom_call.1} parent=5 // pred_check_branch
        %172 = sbr.rel (%p169) target = $region32
      $region31: #{tpu_custom_call.1} parent=5 // pred_region
        %s173 = ssub.s32 %s16, 1
        %s174 = sand.u32 %s29, 1
        %s175 = scalar_lea.sflag [#allocation3], %s174
        %s176 = sand.u32 %s29, 1
        %s177 = smul.addr %s176, 64
        %s178 = scalar_lea.vmem [#allocation2], %s177
        // Predicated region
        $region33: #{tpu_custom_call.1} parent=31 // pred_check
          %p179 = pneg %p42
        $region34: #{tpu_custom_call.1} parent=31 // pred_check_branch
          %181 = sbr.rel (%p179) target = $region36
        $region35: #{tpu_custom_call.1} parent=31 // pred_region
          %182 = dma.done %s175, 1024
        $region36: #{tpu_custom_call.1} parent=31 // pred_fallthru
          _
        // Predicated region
        $region37: #{tpu_custom_call.1} parent=31 // pred_check
          %p183 = pneg %p63
        $region38: #{tpu_custom_call.1} parent=31 // pred_check_branch
          %185 = sbr.rel (%p183) target = $region40
        $region39: #{tpu_custom_call.1} parent=31 // pred_region
          %186 = dma.done [#allocation6], 3072
        $region40: #{tpu_custom_call.1} parent=31 // pred_fallthru
          _
        %s187 = sand.u32 %s29, 1
        %s188 = scalar_lea.sflag [#allocation3], %s187
        %s189 = sand.u32 %s29, 1
        %s190 = smul.addr %s189, 64
        %s191 = scalar_lea.vmem [#allocation2], %s190
        %p192 = pneg %p42
        %p193 = pneg %p39
        %p194 = pneg %p63
        %p195 = pneg %p60
        %p196 = pneg %p84
        %p197 = pneg %p81
        %p198 = pneg %p110
        %p199 = pneg %p107
        %s200 = sand.u32 %s97, 1
        %s201 = scalar_lea.sflag [#allocation4], %s200
        %s202 = sand.u32 %s97, 1
        %s203 = smul.addr %s202, 8
        %s204 = scalar_lea.vmem [#allocation7], %s203
        %s205 = smul.u32 4, %s21
        %v207 = vld [vmem:[%s178] sm:$0xff]
        %v208 = vld [vmem:[%s178 + $0x8] sm:$0xff]
        %v209 = vld [vmem:[%s178 + $0x10] sm:$0xff]
        %v210 = vld [vmem:[%s178 + $0x18] sm:$0xff]
        %v211 = vld [vmem:[%s178 + $0x20] sm:$0xff]
        %v212 = vld [vmem:[%s178 + $0x28] sm:$0xff]
        %v213 = vld [vmem:[%s178 + $0x30] sm:$0xff]
        %v214 = vld [vmem:[%s178 + $0x38] sm:$0xff]
        %v215 = vld [vmem:[#allocation5] sm:$0xff]
        %v216 = vld [vmem:[#allocation5 + $0x8] sm:$0xff]
        %v217 = vld [vmem:[#allocation5 + $0x10] sm:$0xff]
        %v218 = vld [vmem:[#allocation5 + $0x18] sm:$0xff]
        %v219 = vld [vmem:[#allocation5 + $0x20] sm:$0xff]
        %v220 = vld [vmem:[#allocation5 + $0x28] sm:$0xff]
        %v221 = vld [vmem:[#allocation5 + $0x30] sm:$0xff]
        %v222 = vld [vmem:[#allocation5 + $0x38] sm:$0xff]
        %v223 = vld [vmem:[#allocation5 + $0x40] sm:$0xff]
        %v224 = vld [vmem:[#allocation5 + $0x48] sm:$0xff]
        %v225 = vld [vmem:[#allocation5 + $0x50] sm:$0xff]
        %v226 = vld [vmem:[#allocation5 + $0x58] sm:$0xff]
        %v227 = vld [vmem:[#allocation5 + $0x60] sm:$0xff]
        %v228 = vld [vmem:[#allocation5 + $0x68] sm:$0xff]
        %v229 = vld [vmem:[#allocation5 + $0x70] sm:$0xff]
        %v230 = vld [vmem:[#allocation5 + $0x78] sm:$0xff]
        %v231 = vld [vmem:[#allocation5 + $0x80] sm:$0xff]
        %v232 = vld [vmem:[#allocation5 + $0x88] sm:$0xff]
        %v233 = vld [vmem:[#allocation5 + $0x90] sm:$0xff]
        %v234 = vld [vmem:[#allocation5 + $0x98] sm:$0xff]
        %v235 = vld [vmem:[#allocation5 + $0xa0] sm:$0xff]
        %v236 = vld [vmem:[#allocation5 + $0xa8] sm:$0xff]
        %v237 = vld [vmem:[#allocation5 + $0xb0] sm:$0xff]
        %v238 = vld [vmem:[#allocation5 + $0xb8] sm:$0xff]
        %v239 = vld [vmem:[%s2] sm:$0x3]
        %v241 = vlaneseq
        %v242 = vshrl.u32 %v241, 7
        %v243 = vsub.s32 0, %v242
        %v244 = vrot.slane %v239, %v243
        %v245 = vlaneseq
        %v246 = vshrl.u32 %v245, 7
        %v247 = vsub.s32 1, %v246
        %v248 = vrot.slane %v239, %v247
        %v259 = vunpack.c.l.b16 %v207
        %v260 = vunpack.c.h.b16 %v207
        %v261 = vunpack.c.l.b16 %v208
        %v262 = vunpack.c.h.b16 %v208
        %v263 = vunpack.c.l.b16 %v209
        %v264 = vunpack.c.h.b16 %v209
        %v265 = vunpack.c.l.b16 %v210
        %v266 = vunpack.c.h.b16 %v210
        %v267 = vunpack.c.l.b16 %v211
        %v268 = vunpack.c.h.b16 %v211
        %v269 = vunpack.c.l.b16 %v212
        %v270 = vunpack.c.h.b16 %v212
        %v271 = vunpack.c.l.b16 %v213
        %v272 = vunpack.c.h.b16 %v213
        %v273 = vunpack.c.l.b16 %v214
        %v274 = vunpack.c.h.b16 %v214
        %v275 = vpack.c.b16 %v261, %v259
        %v276 = vpack.c.b16 %v262, %v260
        %v277 = vpack.c.b16 %v265, %v263
        %v278 = vpack.c.b16 %v266, %v264
        %v279 = vpack.c.b16 %v269, %v267
        %v280 = vpack.c.b16 %v270, %v268
        %v281 = vpack.c.b16 %v273, %v271
        %v282 = vpack.c.b16 %v274, %v272
        %v311 = vunpack.c.l.b16 %v215
        %v312 = vunpack.c.h.b16 %v215
        %v313 = vunpack.c.l.b16 %v216
        %v314 = vunpack.c.h.b16 %v216
        %v315 = vunpack.c.l.b16 %v217
        %v316 = vunpack.c.h.b16 %v217
        %v317 = vunpack.c.l.b16 %v218
        %v318 = vunpack.c.h.b16 %v218
        %v319 = vunpack.c.l.b16 %v219
        %v320 = vunpack.c.h.b16 %v219
        %v321 = vunpack.c.l.b16 %v220
        %v322 = vunpack.c.h.b16 %v220
        %v323 = vunpack.c.l.b16 %v221
        %v324 = vunpack.c.h.b16 %v221
        %v325 = vunpack.c.l.b16 %v222
        %v326 = vunpack.c.h.b16 %v222
        %v327 = vunpack.c.l.b16 %v223
        %v328 = vunpack.c.h.b16 %v223
        %v329 = vunpack.c.l.b16 %v224
        %v330 = vunpack.c.h.b16 %v224
        %v331 = vunpack.c.l.b16 %v225
        %v332 = vunpack.c.h.b16 %v225
        %v333 = vunpack.c.l.b16 %v226
        %v334 = vunpack.c.h.b16 %v226
        %v335 = vunpack.c.l.b16 %v227
        %v336 = vunpack.c.h.b16 %v227
        %v337 = vunpack.c.l.b16 %v228
        %v338 = vunpack.c.h.b16 %v228
        %v339 = vunpack.c.l.b16 %v229
        %v340 = vunpack.c.h.b16 %v229
        %v341 = vunpack.c.l.b16 %v230
        %v342 = vunpack.c.h.b16 %v230
        %v343 = vunpack.c.l.b16 %v231
        %v344 = vunpack.c.h.b16 %v231
        %v345 = vunpack.c.l.b16 %v232
        %v346 = vunpack.c.h.b16 %v232
        %v347 = vunpack.c.l.b16 %v233
        %v348 = vunpack.c.h.b16 %v233
        %v349 = vunpack.c.l.b16 %v234
        %v350 = vunpack.c.h.b16 %v234
        %v351 = vunpack.c.l.b16 %v235
        %v352 = vunpack.c.h.b16 %v235
        %v353 = vunpack.c.l.b16 %v236
        %v354 = vunpack.c.h.b16 %v236
        %v355 = vunpack.c.l.b16 %v237
        %v356 = vunpack.c.h.b16 %v237
        %v357 = vunpack.c.l.b16 %v238
        %v358 = vunpack.c.h.b16 %v238
        %v359 = vpack.c.b16 %v313, %v311
        %v360 = vpack.c.b16 %v314, %v312
        %v361 = vpack.c.b16 %v317, %v315
        %v362 = vpack.c.b16 %v318, %v316
        %v363 = vpack.c.b16 %v321, %v319
        %v364 = vpack.c.b16 %v322, %v320
        %v365 = vpack.c.b16 %v325, %v323
        %v366 = vpack.c.b16 %v326, %v324
        %v367 = vpack.c.b16 %v329, %v327
        %v368 = vpack.c.b16 %v330, %v328
        %v369 = vpack.c.b16 %v333, %v331
        %v370 = vpack.c.b16 %v334, %v332
        %v371 = vpack.c.b16 %v337, %v335
        %v372 = vpack.c.b16 %v338, %v336
        %v373 = vpack.c.b16 %v341, %v339
        %v374 = vpack.c.b16 %v342, %v340
        %v375 = vpack.c.b16 %v345, %v343
        %v376 = vpack.c.b16 %v346, %v344
        %v377 = vpack.c.b16 %v349, %v347
        %v378 = vpack.c.b16 %v350, %v348
        %v379 = vpack.c.b16 %v353, %v351
        %v380 = vpack.c.b16 %v354, %v352
        %v381 = vpack.c.b16 %v357, %v355
        %v382 = vpack.c.b16 %v358, %v356
        %vm407 = vcmask 523264
        %v409 = vsel %vm407, %v276, 0
        %v412 = vsel %vm407, %v278, 0
        %v415 = vsel %vm407, %v280, 0
        %v418 = vsel %vm407, %v282, 0
        %420 = vmatprep.subr.bf16.mxu0 %v360
        %421 = vmatpush1.bf16.msra.mxu0 %v359
        %422 = vmatprep.subr.bf16.mxu0 %v362
        %423 = vmatpush1.bf16.msra.mxu0 %v361
        %424 = vmatprep.subr.bf16.mxu0 %v364
        %425 = vmatpush1.bf16.msra.mxu0 %v363
        %426 = vmatprep.subr.bf16.mxu0 %v366
        %427 = vmatpush1.bf16.msra.mxu0 %v365
        %428 = vmatprep.subr.bf16.mxu0 %v368
        %429 = vmatpush1.bf16.msra.mxu0 %v367
        %430 = vmatprep.subr.bf16.mxu0 %v370
        %431 = vmatpush1.bf16.msra.mxu0 %v369
        %432 = vmatprep.subr.bf16.mxu0 %v372
        %433 = vmatpush1.bf16.msra.mxu0 %v371
        %434 = vmatprep.subr.bf16.mxu0 %v374
        %435 = vmatpush1.bf16.msra.mxu0 %v373
        %436 = vmatprep.subr.bf16.mxu0 %v376
        %437 = vmatpush1.bf16.msra.mxu0 %v375
        %438 = vmatprep.subr.bf16.mxu0 %v378
        %439 = vmatpush1.bf16.msra.mxu0 %v377
        %440 = vmatprep.subr.bf16.mxu0 %v380
        %441 = vmatpush1.bf16.msra.mxu0 %v379
        %442 = vmatprep.subr.bf16.mxu0 %v382
        %443 = vmatpush1.bf16.msra.mxu0 %v381
        %444 = vmatprep.subr.bf16.mxu0 0
        %445 = vmatpush1.bf16.msra.mxu0 0
        %446 = vmatprep.subr.bf16.mxu0 0
        %447 = vmatpush1.bf16.msra.mxu0 0
        %448 = vmatprep.subr.bf16.mxu0 0
        %449 = vmatpush1.bf16.msra.mxu0 0
        %450 = vmatprep.subr.bf16.mxu0 0
        %451 = vmatpush1.bf16.msra.mxu0 0
        %452 = vmatprep.mubr.bf16.mxu0 %v409
        %453 = vmatmul.mubr.bf16.gmra.mrb[0].mxu0 %v275
        %v454 = vpop.f32.mrb[0].mxu0
        %v455 = vadd.f32 %v244, %v454
        %v456 = vpop.f32.mrb[0].mxu0
        %v457 = vadd.f32 %v248, %v456
        %v458 = vpop.f32.mrb[0].mxu0
        %v459 = vadd.f32 %v244, %v458
        %v460 = vpop.f32.mrb[0].mxu0
        %v461 = vadd.f32 %v248, %v460
        %462 = vmatprep.mubr.bf16.mxu0 %v412
        %463 = vmatmul.mubr.bf16.gmra.mrb[0].mxu0 %v277
        %v464 = vpop.f32.mrb[0].mxu0
        %v465 = vadd.f32 %v244, %v464
        %v466 = vpop.f32.mrb[0].mxu0
        %v467 = vadd.f32 %v248, %v466
        %v468 = vpop.f32.mrb[0].mxu0
        %v469 = vadd.f32 %v244, %v468
        %v470 = vpop.f32.mrb[0].mxu0
        %v471 = vadd.f32 %v248, %v470
        %472 = vmatprep.mubr.bf16.mxu0 %v415
        %473 = vmatmul.mubr.bf16.gmra.mrb[0].mxu0 %v279
        %v474 = vpop.f32.mrb[0].mxu0
        %v475 = vadd.f32 %v244, %v474
        %v476 = vpop.f32.mrb[0].mxu0
        %v477 = vadd.f32 %v248, %v476
        %v478 = vpop.f32.mrb[0].mxu0
        %v479 = vadd.f32 %v244, %v478
        %v480 = vpop.f32.mrb[0].mxu0
        %v481 = vadd.f32 %v248, %v480
        %482 = vmatprep.mubr.bf16.mxu0 %v418
        %483 = vmatmul.mubr.bf16.gmra.mrb[0].mxu0 %v281
        %v484 = vpop.f32.mrb[0].mxu0
        %v485 = vadd.f32 %v244, %v484
        %v486 = vpop.f32.mrb[0].mxu0
        %v487 = vadd.f32 %v248, %v486
        %v488 = vpop.f32.mrb[0].mxu0
        %v489 = vadd.f32 %v244, %v488
        %v490 = vpop.f32.mrb[0].mxu0
        %v491 = vadd.f32 %v248, %v490
        %492 = vdwg.mxu0
        %v493 = vmax.f32 %v455, 0.0
        %v494 = vmax.f32 %v457, 0.0
        %v495 = vmax.f32 %v459, 0.0
        %v496 = vmax.f32 %v461, 0.0
        %v497 = vmax.f32 %v465, 0.0
        %v498 = vmax.f32 %v467, 0.0
        %v499 = vmax.f32 %v469, 0.0
        %v500 = vmax.f32 %v471, 0.0
        %v501 = vmax.f32 %v475, 0.0
        %v502 = vmax.f32 %v477, 0.0
        %v503 = vmax.f32 %v479, 0.0
        %v504 = vmax.f32 %v481, 0.0
        %v505 = vmax.f32 %v485, 0.0
        %v506 = vmax.f32 %v487, 0.0
        %v507 = vmax.f32 %v489, 0.0
        %v508 = vmax.f32 %v491, 0.0
        %v509 = vadd.f32 %v493, %v495
        %v510 = vrot.slane %v509, 4
        %v511 = vadd.f32 %v509, %v510
        %v512 = vrot.slane %v511, 2
        %v513 = vadd.f32 %v511, %v512
        %v514 = vrot.slane %v513, 1
        %v515 = vadd.f32 %v513, %v514
        %v516 = vadd.f32 %v494, %v496
        %v517 = vrot.slane %v516, 4
        %v518 = vadd.f32 %v516, %v517
        %v519 = vrot.slane %v518, 2
        %v520 = vadd.f32 %v518, %v519
        %v521 = vrot.slane %v520, 1
        %v522 = vadd.f32 %v520, %v521
        %v523 = vadd.f32 %v497, %v499
        %v524 = vrot.slane %v523, 4
        %v525 = vadd.f32 %v523, %v524
        %v526 = vrot.slane %v525, 2
        %v527 = vadd.f32 %v525, %v526
        %v528 = vrot.slane %v527, 1
        %v529 = vadd.f32 %v527, %v528
        %v530 = vadd.f32 %v498, %v500
        %v531 = vrot.slane %v530, 4
        %v532 = vadd.f32 %v530, %v531
        %v533 = vrot.slane %v532, 2
        %v534 = vadd.f32 %v532, %v533
        %v535 = vrot.slane %v534, 1
        %v536 = vadd.f32 %v534, %v535
        %v537 = vadd.f32 %v501, %v503
        %v538 = vrot.slane %v537, 4
        %v539 = vadd.f32 %v537, %v538
        %v540 = vrot.slane %v539, 2
        %v541 = vadd.f32 %v539, %v540
        %v542 = vrot.slane %v541, 1
        %v543 = vadd.f32 %v541, %v542
        %v544 = vadd.f32 %v502, %v504
        %v545 = vrot.slane %v544, 4
        %v546 = vadd.f32 %v544, %v545
        %v547 = vrot.slane %v546, 2
        %v548 = vadd.f32 %v546, %v547
        %v549 = vrot.slane %v548, 1
        %v550 = vadd.f32 %v548, %v549
        %v551 = vadd.f32 %v505, %v507
        %v552 = vrot.slane %v551, 4
        %v553 = vadd.f32 %v551, %v552
        %v554 = vrot.slane %v553, 2
        %v555 = vadd.f32 %v553, %v554
        %v556 = vrot.slane %v555, 1
        %v557 = vadd.f32 %v555, %v556
        %v558 = vadd.f32 %v506, %v508
        %v559 = vrot.slane %v558, 4
        %v560 = vadd.f32 %v558, %v559
        %v561 = vrot.slane %v560, 2
        %v562 = vadd.f32 %v560, %v561
        %v563 = vrot.slane %v562, 1
        %v564 = vadd.f32 %v562, %v563
        %v565 = vrcp.pop 16.0
        %v566 = vmul.f32 %v515, %v565
        %v567 = vmul.f32 %v522, %v565
        %v568 = vmul.f32 %v529, %v565
        %v569 = vmul.f32 %v536, %v565
        %v570 = vmul.f32 %v543, %v565
        %v571 = vmul.f32 %v550, %v565
        %v572 = vmul.f32 %v557, %v565
        %v573 = vmul.f32 %v564, %v565
        %v574 = vmul.f32 %v493, %v493
        %v575 = vmul.f32 %v494, %v494
        %v576 = vmul.f32 %v495, %v495
        %v577 = vmul.f32 %v496, %v496
        %v578 = vmul.f32 %v497, %v497
        %v579 = vmul.f32 %v498, %v498
        %v580 = vmul.f32 %v499, %v499
        %v581 = vmul.f32 %v500, %v500
        %v582 = vmul.f32 %v501, %v501
        %v583 = vmul.f32 %v502, %v502
        %v584 = vmul.f32 %v503, %v503
        %v585 = vmul.f32 %v504, %v504
        %v586 = vmul.f32 %v505, %v505
        %v587 = vmul.f32 %v506, %v506
        %v588 = vmul.f32 %v507, %v507
        %v589 = vmul.f32 %v508, %v508
        %v590 = vadd.f32 %v574, %v576
        %v591 = vrot.slane %v590, 4
        %v592 = vadd.f32 %v590, %v591
        %v593 = vrot.slane %v592, 2
        %v594 = vadd.f32 %v592, %v593
        %v595 = vrot.slane %v594, 1
        %v596 = vadd.f32 %v594, %v595
        %v597 = vadd.f32 %v575, %v577
        %v598 = vrot.slane %v597, 4
        %v599 = vadd.f32 %v597, %v598
        %v600 = vrot.slane %v599, 2
        %v601 = vadd.f32 %v599, %v600
        %v602 = vrot.slane %v601, 1
        %v603 = vadd.f32 %v601, %v602
        %v604 = vadd.f32 %v578, %v580
        %v605 = vrot.slane %v604, 4
        %v606 = vadd.f32 %v604, %v605
        %v607 = vrot.slane %v606, 2
        %v608 = vadd.f32 %v606, %v607
        %v609 = vrot.slane %v608, 1
        %v610 = vadd.f32 %v608, %v609
        %v611 = vadd.f32 %v579, %v581
        %v612 = vrot.slane %v611, 4
        %v613 = vadd.f32 %v611, %v612
        %v614 = vrot.slane %v613, 2
        %v615 = vadd.f32 %v613, %v614
        %v616 = vrot.slane %v615, 1
        %v617 = vadd.f32 %v615, %v616
        %v618 = vadd.f32 %v582, %v584
        %v619 = vrot.slane %v618, 4
        %v620 = vadd.f32 %v618, %v619
        %v621 = vrot.slane %v620, 2
        %v622 = vadd.f32 %v620, %v621
        %v623 = vrot.slane %v622, 1
        %v624 = vadd.f32 %v622, %v623
        %v625 = vadd.f32 %v583, %v585
        %v626 = vrot.slane %v625, 4
        %v627 = vadd.f32 %v625, %v626
        %v628 = vrot.slane %v627, 2
        %v629 = vadd.f32 %v627, %v628
        %v630 = vrot.slane %v629, 1
        %v631 = vadd.f32 %v629, %v630
        %v632 = vadd.f32 %v586, %v588
        %v633 = vrot.slane %v632, 4
        %v634 = vadd.f32 %v632, %v633
        %v635 = vrot.slane %v634, 2
        %v636 = vadd.f32 %v634, %v635
        %v637 = vrot.slane %v636, 1
        %v638 = vadd.f32 %v636, %v637
        %v639 = vadd.f32 %v587, %v589
        %v640 = vrot.slane %v639, 4
        %v641 = vadd.f32 %v639, %v640
        %v642 = vrot.slane %v641, 2
        %v643 = vadd.f32 %v641, %v642
        %v644 = vrot.slane %v643, 1
        %v645 = vadd.f32 %v643, %v644
        %v646 = vmul.f32 %v596, %v565
        %v647 = vmul.f32 %v603, %v565
        %v648 = vmul.f32 %v610, %v565
        %v649 = vmul.f32 %v617, %v565
        %v650 = vmul.f32 %v624, %v565
        %v651 = vmul.f32 %v631, %v565
        %v652 = vmul.f32 %v638, %v565
        %v653 = vmul.f32 %v645, %v565
        %v654 = vmul.f32 %v566, %v566
        %v655 = vmul.f32 %v567, %v567
        %v656 = vmul.f32 %v568, %v568
        %v657 = vmul.f32 %v569, %v569
        %v658 = vmul.f32 %v570, %v570
        %v659 = vmul.f32 %v571, %v571
        %v660 = vmul.f32 %v572, %v572
        %v661 = vmul.f32 %v573, %v573
        %v662 = vsub.f32 %v646, %v654
        %v663 = vsub.f32 %v647, %v655
        %v664 = vsub.f32 %v648, %v656
        %v665 = vsub.f32 %v649, %v657
        %v666 = vsub.f32 %v650, %v658
        %v667 = vsub.f32 %v651, %v659
        %v668 = vsub.f32 %v652, %v660
        %v669 = vsub.f32 %v653, %v661
        %v670 = vmax.f32 %v662, 0.0
        %v671 = vmax.f32 %v663, 0.0
        %v672 = vmax.f32 %v664, 0.0
        %v673 = vmax.f32 %v665, 0.0
        %v674 = vmax.f32 %v666, 0.0
        %v675 = vmax.f32 %v667, 0.0
        %v676 = vmax.f32 %v668, 0.0
        %v677 = vmax.f32 %v669, 0.0
        %v678 = vadd.f32 %v670, 1e-05
        %v679 = vadd.f32 %v671, 1e-05
        %v680 = vadd.f32 %v672, 1e-05
        %v681 = vadd.f32 %v673, 1e-05
        %v682 = vadd.f32 %v674, 1e-05
        %v683 = vadd.f32 %v675, 1e-05
        %v684 = vadd.f32 %v676, 1e-05
        %v685 = vadd.f32 %v677, 1e-05
        %v686 = vrsqrt.pop %v678
        %v687 = vrsqrt.pop %v679
        %v688 = vrsqrt.pop %v680
        %v689 = vrsqrt.pop %v681
        %v690 = vrsqrt.pop %v682
        %v691 = vrsqrt.pop %v683
        %v692 = vrsqrt.pop %v684
        %v693 = vrsqrt.pop %v685
        %v694 = vmax.f32 %v493, %v495
        %v695 = vrot.slane %v694, 4
        %v696 = vmax.f32 %v694, %v695
        %v697 = vrot.slane %v696, 2
        %v698 = vmax.f32 %v696, %v697
        %v699 = vrot.slane %v698, 1
        %v700 = vmax.f32 %v698, %v699
        %v701 = vmax.f32 %v494, %v496
        %v702 = vrot.slane %v701, 4
        %v703 = vmax.f32 %v701, %v702
        %v704 = vrot.slane %v703, 2
        %v705 = vmax.f32 %v703, %v704
        %v706 = vrot.slane %v705, 1
        %v707 = vmax.f32 %v705, %v706
        %v708 = vmax.f32 %v497, %v499
        %v709 = vrot.slane %v708, 4
        %v710 = vmax.f32 %v708, %v709
        %v711 = vrot.slane %v710, 2
        %v712 = vmax.f32 %v710, %v711
        %v713 = vrot.slane %v712, 1
        %v714 = vmax.f32 %v712, %v713
        %v715 = vmax.f32 %v498, %v500
        %v716 = vrot.slane %v715, 4
        %v717 = vmax.f32 %v715, %v716
        %v718 = vrot.slane %v717, 2
        %v719 = vmax.f32 %v717, %v718
        %v720 = vrot.slane %v719, 1
        %v721 = vmax.f32 %v719, %v720
        %v722 = vmax.f32 %v501, %v503
        %v723 = vrot.slane %v722, 4
        %v724 = vmax.f32 %v722, %v723
        %v725 = vrot.slane %v724, 2
        %v726 = vmax.f32 %v724, %v725
        %v727 = vrot.slane %v726, 1
        %v728 = vmax.f32 %v726, %v727
        %v729 = vmax.f32 %v502, %v504
        %v730 = vrot.slane %v729, 4
        %v731 = vmax.f32 %v729, %v730
        %v732 = vrot.slane %v731, 2
        %v733 = vmax.f32 %v731, %v732
        %v734 = vrot.slane %v733, 1
        %v735 = vmax.f32 %v733, %v734
        %v736 = vmax.f32 %v505, %v507
        %v737 = vrot.slane %v736, 4
        %v738 = vmax.f32 %v736, %v737
        %v739 = vrot.slane %v738, 2
        %v740 = vmax.f32 %v738, %v739
        %v741 = vrot.slane %v740, 1
        %v742 = vmax.f32 %v740, %v741
        %v743 = vmax.f32 %v506, %v508
        %v744 = vrot.slane %v743, 4
        %v745 = vmax.f32 %v743, %v744
        %v746 = vrot.slane %v745, 2
        %v747 = vmax.f32 %v745, %v746
        %v748 = vrot.slane %v747, 1
        %v749 = vmax.f32 %v747, %v748
        %v750 = vsub.f32 %v700, %v566
        %v751 = vsub.f32 %v707, %v567
        %v752 = vsub.f32 %v714, %v568
        %v753 = vsub.f32 %v721, %v569
        %v754 = vsub.f32 %v728, %v570
        %v755 = vsub.f32 %v735, %v571
        %v756 = vsub.f32 %v742, %v572
        %v757 = vsub.f32 %v749, %v573
        %v758 = vmul.f32 %v750, 0.4
        %v759 = vmul.f32 %v751, 0.4
        %v760 = vmul.f32 %v752, 0.4
        %v761 = vmul.f32 %v753, 0.4
        %v762 = vmul.f32 %v754, 0.4
        %v763 = vmul.f32 %v755, 0.4
        %v764 = vmul.f32 %v756, 0.4
        %v765 = vmul.f32 %v757, 0.4
        %v766 = vmul.f32 %v758, %v686
        %v767 = vmul.f32 %v759, %v687
        %v768 = vmul.f32 %v760, %v688
        %v769 = vmul.f32 %v761, %v689
        %v770 = vmul.f32 %v762, %v690
        %v771 = vmul.f32 %v763, %v691
        %v772 = vmul.f32 %v764, %v692
        %v773 = vmul.f32 %v765, %v693
        %v782 = vcombine.low %v766, %v767
        %v783 = vcombine.low %v768, %v769
        %v784 = vcombine.low %v770, %v771
        %v785 = vcombine.low %v772, %v773
        %v786 = vrot.slane %v783, 7
        %vm787 = vcmask 1041409
        %v788 = vsel %vm787, %v786, %v782
        %vm789 = vcmask 1045509
        %v790 = vsel %vm789, %v786, %v788
        %v791 = vrot.slane %v784, 6
        %vm792 = vcmask 1042434
        %v793 = vsel %vm792, %v791, %v790
        %vm794 = vcmask 1046534
        %v795 = vsel %vm794, %v791, %v793
        %v796 = vrot.slane %v785, 5
        %vm797 = vcmask 1043459
        %v798 = vsel %vm797, %v796, %v795
        %vm799 = vcmask 1047559
        %v800 = vsel %vm799, %v796, %v798
        %802 = vst [vmem:[%s204] sm:$0xff] %v800
        %s803 = sand.u32 %s97, 1
        %s804 = scalar_lea.sflag [#allocation4], %s803
        %s805 = sand.u32 %s97, 1
        %s806 = smul.addr %s805, 8
        %s807 = scalar_lea.vmem [#allocation7], %s806
        // Predicated region
        $region41: #{tpu_custom_call.1} parent=31 // pred_check
          %p808 = pneg %p107
        $region42: #{tpu_custom_call.1} parent=31 // pred_check_branch
          %810 = sbr.rel (%p808) target = $region44
        $region43: #{tpu_custom_call.1} parent=31 // pred_region
          %s812 = ssub.s32 128, 128
          %813 = vsyncadd %s804, %s812
          %s814 = smul.addr %s21, 2
          %s815 = smul.addr %s814, 64
          %s816 = scalar_lea.hbm %s3, %s815
          %s818 = sshll.u32 %s807, 4
          %s819 = int_to_ptr.vmem [resolvable:$true] %s818
          %821 = dma.vmem_to_hbm [thread:$0]  %s819, 128, %s816, %s804
        $region44: #{tpu_custom_call.1} parent=31 // pred_fallthru
          _
      $region32: #{tpu_custom_call.1} parent=5 // pred_fallthru
        _
      %p822 = scmp.le.s32.totalorder 2, %s16
      // Predicated region
      $region45: #{tpu_custom_call.1} parent=5 // pred_check
        %p823 = pneg %p822
      $region46: #{tpu_custom_call.1} parent=5 // pred_check_branch
        %825 = sbr.rel (%p823) target = $region48
      $region47: #{tpu_custom_call.1} parent=5 // pred_region
        %s826 = ssub.s32 %s16, 2
        // Predicated region
        $region49: #{tpu_custom_call.1} parent=47 // pred_check
          %p827 = pneg %p113
        $region50: #{tpu_custom_call.1} parent=47 // pred_check_branch
          %829 = sbr.rel (%p827) target = $region52
        $region51: #{tpu_custom_call.1} parent=47 // pred_region
          %s830 = sand.u32 %s98, 1
          %s831 = scalar_lea.sflag [#allocation4], %s830
          %s832 = sand.u32 %s98, 1
          %s833 = smul.addr %s832, 8
          %s834 = scalar_lea.vmem [#allocation7], %s833
          %835 = dma.done %s831, 128
        $region52: #{tpu_custom_call.1} parent=47 // pred_fallthru
          _
      $region48: #{tpu_custom_call.1} parent=5 // pred_fallthru
        _
    $region6: #{tpu_custom_call.1} parent=1 // loop_footer
      %s20 = sadd.s32 1, %s16
    $region7: #{tpu_custom_call.1} parent=1 // loop_footer_branch
      %15 = sbr.rel target = $region3
    $region8: #{tpu_custom_call.1} parent=1 // loop_exit
      _
    %836 = vsyncpa [#allocation3], 1
    %s837 = scalar_lea.sflag [#allocation3], 1
    %838 = vsyncpa %s837, 1
    %839 = vsyncpa [#allocation6], 1
    %840 = vsyncpa [#allocation4], 1
    %s841 = scalar_lea.sflag [#allocation4], 1
    %842 = vsyncpa %s841, 1

</llo_original>
